<compile_context>
chip_gen: v5e
topology: v5e:2x2
jax: 0.10.0
libtpu: 0.0.40
codegen_flags: <defaults>
</compile_context>

<pallas_src>
import functools

import jax
import jax.numpy as jnp
from jax.experimental import pallas as pl
from jax.experimental.pallas import tpu as pltpu  # noqa: F401  (kept for TPU-specific tuning hooks)

# -------------------- hyperparameters (stand-in for `hp`) --------------------
RNN_INPUT_SIZE = 8
RNN_HIDDEN_SIZES = [32, 32]
RNN_ACTIVATIONS = ["relu"]          # applied after each intermediate fc
RNN_OUTPUT_SIZE = 4

_SUB = 8  # TPU sublane granularity (rows of a vreg)


def _round_up(n, m):
    return ((n + m - 1) // m) * m


# ------------------------------- Pallas kernel -------------------------------
def _apply_activation(y, act):
    if act == "relu":
        return jnp.maximum(y, 0.0)
    if act == "tanh":
        return jnp.tanh(y)
    return y  # identity


def frnn_kernel(x_ref, w_ref, o_ref, *, T, B, D, hidden_sizes, out_size,
                activations, offsets):
    """Fully fused FRNN forward.

    x_ref : (B, T, D)      input, exactly as the user passes it (no host reshuffle)
    w_ref : (R, LW)        single packed f32 weight buffer (one DMA); segments are
                           8-row-aligned and carved with static slices below
    o_ref : (B, out_size)  output
    """
    H0 = hidden_sizes[0]
    PB = max(_SUB, _round_up(B, _SUB))      # sublane-padded batch

    def carve(name, rows, cols):
        off = offsets[name]                 # static Python int, 8-aligned
        blk = w_ref[off:off + rows, :]      # full-lane static ref slice (free)
        return blk[:, :cols] if cols != blk.shape[1] else blk

    wih = carve("wih", D, H0)               # (D, H0)   = W_ih^T
    whh = carve("whh", H0, H0)              # (H0, H0)  = W_hh^T
    brnn = carve("brnn", 1, H0)             # (1, H0)   = b_ih + b_hh

    # ---- off-critical-path precompute: padded, time-major projected inputs ----
    # xp[t*PB + b, :] = x[b, t, :] @ W_ih^T + (b_ih + b_hh)  for b < B, 0 otherwise.
    # Built with tiny constant selection matmuls (no XLU sublane shuffles anywhere).
    r_idx = jax.lax.broadcasted_iota(jnp.int32, (T * PB, T), 0)
    c_idx = jax.lax.broadcasted_iota(jnp.int32, (T * PB, T), 1)
    xp = jnp.zeros((T * PB, H0), jnp.float32)
    for b in range(B):
        proj_b = jnp.dot(x_ref[b], wih, preferred_element_type=jnp.float32) + brnn  # (T, H0)
        sel_b = jnp.where(r_idx == c_idx * PB + b,
                          jnp.float32(1.0), jnp.float32(0.0))                        # (T*PB, T)
        xp = xp + jnp.dot(sel_b, proj_b, preferred_element_type=jnp.float32)

    # ---- serial recurrence: only h @ W_hh + aligned vreg read + tanh on the chain ----
    h = jnp.zeros((PB, H0), jnp.float32)    # padded rows are exactly zero and stay zero
    for t in range(T):
        h = jnp.tanh(xp[t * PB:(t + 1) * PB, :] +
                     jnp.dot(h, whh, preferred_element_type=jnp.float32))

    # ---- intermediate fc stack + final fc on the LAST hidden state only ----
    # (position-wise Linear => identical to fc(full sequence)[:, -1, :])
    z = h
    for i in range(len(hidden_sizes) - 1):
        fin, fout = hidden_sizes[i], hidden_sizes[i + 1]
        w = carve(f"fc{i}_w", fin, fout)
        bb = carve(f"fc{i}_b", 1, fout)
        z = _apply_activation(
            jnp.dot(z, w, preferred_element_type=jnp.float32) + bb, activations[i])

    wf = carve("fc_w", hidden_sizes[-1], out_size)
    bf = carve("fc_b", 1, out_size)
    y = jnp.dot(z, wf, preferred_element_type=jnp.float32) + bf      # (PB, out)
    o_ref[...] = y[:B, :].astype(o_ref.dtype)                        # only real rows


# ------------------------------ weight packing ------------------------------
def pack_params(params):
    """Concatenate all weights/biases into one (R, LW) f32 buffer (one DMA).

    Every segment is padded to a multiple of 8 rows so in-kernel carves are
    sublane-aligned.  Returns (packed_buffer, {name: row_offset}).
    """
    H0 = params["whh"].shape[0]
    out_size = params["fc_w"].shape[1]
    col_dims = [params["wih"].shape[1], H0] + \
               [w.shape[1] for (w, _) in params["fcs"]] + [out_size]
    LW = max(col_dims)

    segs, offsets = [], {}

    def add(name, mat):
        mat = jnp.asarray(mat, jnp.float32)
        rows = _round_up(mat.shape[0], _SUB)
        offsets[name] = sum(int(s.shape[0]) for s in segs)
        seg = jnp.zeros((rows, LW), jnp.float32).at[:mat.shape[0], :mat.shape[1]].set(mat)
        segs.append(seg)

    add("wih", params["wih"])
    add("whh", params["whh"])
    add("brnn", params["b_rnn"])
    for i, (w, b) in enumerate(params["fcs"]):
        add(f"fc{i}_w", w)
        add(f"fc{i}_b", b)
    add("fc_w", params["fc_w"])
    add("fc_b", params["fc_b"])

    packed = jnp.concatenate(segs, axis=0)   # (128, 32) for the default config
    return packed, offsets


# ------------------------------ JAX-side wrapper ------------------------------
def _full_spec(shape):
    ndim = len(shape)
    return pl.BlockSpec(tuple(shape), lambda: (0,) * ndim)


def frnn_forward(x, packed, offsets):
    """x: (B, T, D) float32 -> (B, RNN_OUTPUT_SIZE) float32.  Single fused pallas_call,
    two operand DMAs (x and the packed weight buffer), no host-side reshuffles."""
    B, T, D = x.shape
    assert len(RNN_ACTIVATIONS) >= len(RNN_HIDDEN_SIZES) - 1, \
        "need one activation per intermediate fc"

    kernel = functools.partial(
        frnn_kernel, T=T, B=B, D=D,
        hidden_sizes=tuple(RNN_HIDDEN_SIZES),
        out_size=RNN_OUTPUT_SIZE,
        activations=tuple(RNN_ACTIVATIONS),
        offsets=dict(offsets))

    return pl.pallas_call(
        kernel,
        out_shape=jax.ShapeDtypeStruct((B, RNN_OUTPUT_SIZE), jnp.float32),
        in_specs=[_full_spec(x.shape), _full_spec(packed.shape)],
        out_specs=_full_spec((B, RNN_OUTPUT_SIZE)),
    )(x, packed)


# ------------------------------ pure-JAX reference ------------------------------
def frnn_reference(x, params):
    B, T, D = x.shape
    h = jnp.zeros((B, params["whh"].shape[0]), jnp.float32)
    for t in range(T):
        h = jnp.tanh(x[:, t, :] @ params["wih"] + h @ params["whh"] + params["b_rnn"])
    z = h
    for (w, b), act in zip(params["fcs"], RNN_ACTIVATIONS):
        z = z @ w + b
        z = jnp.maximum(z, 0.0) if act == "relu" else (jnp.tanh(z) if act == "tanh" else z)
    return z @ params["fc_w"] + params["fc_b"]


# ------------------------------ parameter init ------------------------------
def init_params(key):
    """Deterministic init mimicking PyTorch's U(-1/sqrt(fan), 1/sqrt(fan))."""
    H0 = RNN_HIDDEN_SIZES[0]
    D = RNN_INPUT_SIZE
    keys = jax.random.split(key, 16)
    k = iter(keys)

    def unif(kk, shape, fan):
        bound = 1.0 / jnp.sqrt(jnp.float32(fan))
        return jax.random.uniform(kk, shape, jnp.float32, -bound, bound)

    params = {}
    # nn.RNN weights: W_ih (H0, D), W_hh (H0, H0), b_ih (H0,), b_hh (H0,)
    W_ih = unif(next(k), (H0, D), H0)
    W_hh = unif(next(k), (H0, H0), H0)
    b_ih = unif(next(k), (H0,), H0)
    b_hh = unif(next(k), (H0,), H0)
    params["wih"] = W_ih.T                                    # (D, H0)
    params["whh"] = W_hh.T                                    # (H0, H0)
    params["b_rnn"] = (b_ih + b_hh).reshape(1, H0)            # (1, H0)

    # intermediate fcs: Linear(H_i, H_{i+1})
    fcs = []
    for i in range(len(RNN_HIDDEN_SIZES) - 1):
        fin, fout = RNN_HIDDEN_SIZES[i], RNN_HIDDEN_SIZES[i + 1]
        W = unif(next(k), (fout, fin), fin)
        b = unif(next(k), (fout,), fin)
        fcs.append((W.T, b.reshape(1, fout)))
    params["fcs"] = fcs

    # final fc: Linear(H_last, output_size)
    fin, fout = RNN_HIDDEN_SIZES[-1], RNN_OUTPUT_SIZE
    W = unif(next(k), (fout, fin), fin)
    b = unif(next(k), (fout,), fin)
    params["fc_w"] = W.T                                      # (H_last, out)
    params["fc_b"] = b.reshape(1, fout)
    return params


# ----------------------------------- main -----------------------------------
if __name__ == "__main__":
    B, T, D = 2, 8, RNN_INPUT_SIZE
    key = jax.random.PRNGKey(0)
    kx, kp = jax.random.split(key)
    x = jax.random.normal(kx, (B, T, D), jnp.float32)
    params = init_params(kp)
    packed, offsets = pack_params(params)   # one-time packing (not per-forward)

    y = frnn_forward(x, packed, offsets)
    jax.block_until_ready(y)
    assert y.shape == (B, RNN_OUTPUT_SIZE), y.shape

    y_ref = frnn_reference(x, params)
    assert jnp.allclose(y, y_ref, atol=1e-3, rtol=1e-3), (y, y_ref)

    print("KERNEL_OK")
</pallas_src>

<mosaic_0001>
module attributes {stable_mosaic.version = 11 : i64} {
  func.func @frnn_kernel(%arg0: memref<2x8x8xf32, #tpu.memory_space<vmem>>, %arg1: memref<128x32xf32, #tpu.memory_space<vmem>>, %arg2: memref<2x4xf32, #tpu.memory_space<vmem>>) attributes {dimension_semantics = [], scalar_prefetch = 0 : i64, scratch_operands = 0 : i64, tpu.core_type = #tpu.core_type<tc>} {
    %c0 = arith.constant 0 : index
    %c0_0 = arith.constant 0 : index
    %0 = vector.load %arg1[%c0, %c0_0] : memref<128x32xf32, #tpu.memory_space<vmem>>, vector<8x32xf32>
    %c8 = arith.constant 8 : index
    %c0_1 = arith.constant 0 : index
    %1 = vector.load %arg1[%c8, %c0_1] : memref<128x32xf32, #tpu.memory_space<vmem>>, vector<32x32xf32>
    %c40 = arith.constant 40 : index
    %c0_2 = arith.constant 0 : index
    %2 = vector.load %arg1[%c40, %c0_2] : memref<128x32xf32, #tpu.memory_space<vmem>>, vector<1x32xf32>
    %3 = tpu.iota {dimensions = array<i32: 0>} : vector<64x8xi32>
    %4 = tpu.iota {dimensions = array<i32: 1>} : vector<64x8xi32>
    %cst = arith.constant 0.000000e+00 : f32
    %5 = vector.broadcast %cst : f32 to vector<64x32xf32>
    %c0_3 = arith.constant 0 : index
    %c0_4 = arith.constant 0 : index
    %c0_5 = arith.constant 0 : index
    %6 = vector.load %arg0[%c0_3, %c0_4, %c0_5] : memref<2x8x8xf32, #tpu.memory_space<vmem>>, vector<1x8x8xf32>
    %7 = vector.shape_cast %6 : vector<1x8x8xf32> to vector<8x8xf32>
    %cst_6 = arith.constant dense<0.000000e+00> : vector<8x32xf32>
    %8 = tpu.matmul %7, %0, %cst_6 {dimension_numbers = #tpu.dot_dimension_numbers<[1], [0], [0], [1], [0, 0, 1, 1], [], []>} : vector<8x8xf32>, vector<8x32xf32>, vector<8x32xf32> -> vector<8x32xf32>
    %9 = vector.broadcast %2 : vector<1x32xf32> to vector<8x32xf32>
    %10 = arith.addf %8, %9 : vector<8x32xf32>
    %c8_i32 = arith.constant 8 : i32
    %11 = vector.broadcast %c8_i32 : i32 to vector<64x8xi32>
    %12 = arith.muli %4, %11 : vector<64x8xi32>
    %c0_i32 = arith.constant 0 : i32
    %13 = vector.broadcast %c0_i32 : i32 to vector<64x8xi32>
    %14 = arith.addi %12, %13 : vector<64x8xi32>
    %15 = arith.cmpi eq, %3, %14 : vector<64x8xi32>
    %cst_7 = arith.constant 1.000000e+00 : f32
    %cst_8 = arith.constant 0.000000e+00 : f32
    %16 = vector.broadcast %cst_7 : f32 to vector<64x8xf32>
    %17 = vector.broadcast %cst_8 : f32 to vector<64x8xf32>
    %18 = arith.select %15, %16, %17 : vector<64x8xi1>, vector<64x8xf32>
    %cst_9 = arith.constant dense<0.000000e+00> : vector<64x32xf32>
    %19 = tpu.matmul %18, %10, %cst_9 {dimension_numbers = #tpu.dot_dimension_numbers<[1], [0], [0], [1], [0, 0, 1, 1], [], []>} : vector<64x8xf32>, vector<8x32xf32>, vector<64x32xf32> -> vector<64x32xf32>
    %20 = arith.addf %5, %19 : vector<64x32xf32>
    %c1 = arith.constant 1 : index
    %c0_10 = arith.constant 0 : index
    %c0_11 = arith.constant 0 : index
    %21 = vector.load %arg0[%c1, %c0_10, %c0_11] : memref<2x8x8xf32, #tpu.memory_space<vmem>>, vector<1x8x8xf32>
    %22 = vector.shape_cast %21 : vector<1x8x8xf32> to vector<8x8xf32>
    %cst_12 = arith.constant dense<0.000000e+00> : vector<8x32xf32>
    %23 = tpu.matmul %22, %0, %cst_12 {dimension_numbers = #tpu.dot_dimension_numbers<[1], [0], [0], [1], [0, 0, 1, 1], [], []>} : vector<8x8xf32>, vector<8x32xf32>, vector<8x32xf32> -> vector<8x32xf32>
    %24 = vector.broadcast %2 : vector<1x32xf32> to vector<8x32xf32>
    %25 = arith.addf %23, %24 : vector<8x32xf32>
    %c8_i32_13 = arith.constant 8 : i32
    %26 = vector.broadcast %c8_i32_13 : i32 to vector<64x8xi32>
    %27 = arith.muli %4, %26 : vector<64x8xi32>
    %c1_i32 = arith.constant 1 : i32
    %28 = vector.broadcast %c1_i32 : i32 to vector<64x8xi32>
    %29 = arith.addi %27, %28 : vector<64x8xi32>
    %30 = arith.cmpi eq, %3, %29 : vector<64x8xi32>
    %cst_14 = arith.constant 1.000000e+00 : f32
    %cst_15 = arith.constant 0.000000e+00 : f32
    %31 = vector.broadcast %cst_14 : f32 to vector<64x8xf32>
    %32 = vector.broadcast %cst_15 : f32 to vector<64x8xf32>
    %33 = arith.select %30, %31, %32 : vector<64x8xi1>, vector<64x8xf32>
    %cst_16 = arith.constant dense<0.000000e+00> : vector<64x32xf32>
    %34 = tpu.matmul %33, %25, %cst_16 {dimension_numbers = #tpu.dot_dimension_numbers<[1], [0], [0], [1], [0, 0, 1, 1], [], []>} : vector<64x8xf32>, vector<8x32xf32>, vector<64x32xf32> -> vector<64x32xf32>
    %35 = arith.addf %20, %34 : vector<64x32xf32>
    %cst_17 = arith.constant 0.000000e+00 : f32
    %36 = vector.broadcast %cst_17 : f32 to vector<8x32xf32>
    %37 = vector.extract_strided_slice %35 {offsets = [0, 0], sizes = [8, 32], strides = [1, 1]} : vector<64x32xf32> to vector<8x32xf32>
    %cst_18 = arith.constant dense<0.000000e+00> : vector<8x32xf32>
    %38 = tpu.matmul %36, %1, %cst_18 {dimension_numbers = #tpu.dot_dimension_numbers<[1], [0], [0], [1], [0, 0, 1, 1], [], []>} : vector<8x32xf32>, vector<32x32xf32>, vector<8x32xf32> -> vector<8x32xf32>
    %39 = arith.addf %37, %38 : vector<8x32xf32>
    %40 = math.tanh %39 : vector<8x32xf32>
    %41 = vector.extract_strided_slice %35 {offsets = [8, 0], sizes = [8, 32], strides = [1, 1]} : vector<64x32xf32> to vector<8x32xf32>
    %cst_19 = arith.constant dense<0.000000e+00> : vector<8x32xf32>
    %42 = tpu.matmul %40, %1, %cst_19 {dimension_numbers = #tpu.dot_dimension_numbers<[1], [0], [0], [1], [0, 0, 1, 1], [], []>} : vector<8x32xf32>, vector<32x32xf32>, vector<8x32xf32> -> vector<8x32xf32>
    %43 = arith.addf %41, %42 : vector<8x32xf32>
    %44 = math.tanh %43 : vector<8x32xf32>
    %45 = vector.extract_strided_slice %35 {offsets = [16, 0], sizes = [8, 32], strides = [1, 1]} : vector<64x32xf32> to vector<8x32xf32>
    %cst_20 = arith.constant dense<0.000000e+00> : vector<8x32xf32>
    %46 = tpu.matmul %44, %1, %cst_20 {dimension_numbers = #tpu.dot_dimension_numbers<[1], [0], [0], [1], [0, 0, 1, 1], [], []>} : vector<8x32xf32>, vector<32x32xf32>, vector<8x32xf32> -> vector<8x32xf32>
    %47 = arith.addf %45, %46 : vector<8x32xf32>
    %48 = math.tanh %47 : vector<8x32xf32>
    %49 = vector.extract_strided_slice %35 {offsets = [24, 0], sizes = [8, 32], strides = [1, 1]} : vector<64x32xf32> to vector<8x32xf32>
    %cst_21 = arith.constant dense<0.000000e+00> : vector<8x32xf32>
    %50 = tpu.matmul %48, %1, %cst_21 {dimension_numbers = #tpu.dot_dimension_numbers<[1], [0], [0], [1], [0, 0, 1, 1], [], []>} : vector<8x32xf32>, vector<32x32xf32>, vector<8x32xf32> -> vector<8x32xf32>
    %51 = arith.addf %49, %50 : vector<8x32xf32>
    %52 = math.tanh %51 : vector<8x32xf32>
    %53 = vector.extract_strided_slice %35 {offsets = [32, 0], sizes = [8, 32], strides = [1, 1]} : vector<64x32xf32> to vector<8x32xf32>
    %cst_22 = arith.constant dense<0.000000e+00> : vector<8x32xf32>
    %54 = tpu.matmul %52, %1, %cst_22 {dimension_numbers = #tpu.dot_dimension_numbers<[1], [0], [0], [1], [0, 0, 1, 1], [], []>} : vector<8x32xf32>, vector<32x32xf32>, vector<8x32xf32> -> vector<8x32xf32>
    %55 = arith.addf %53, %54 : vector<8x32xf32>
    %56 = math.tanh %55 : vector<8x32xf32>
    %57 = vector.extract_strided_slice %35 {offsets = [40, 0], sizes = [8, 32], strides = [1, 1]} : vector<64x32xf32> to vector<8x32xf32>
    %cst_23 = arith.constant dense<0.000000e+00> : vector<8x32xf32>
    %58 = tpu.matmul %56, %1, %cst_23 {dimension_numbers = #tpu.dot_dimension_numbers<[1], [0], [0], [1], [0, 0, 1, 1], [], []>} : vector<8x32xf32>, vector<32x32xf32>, vector<8x32xf32> -> vector<8x32xf32>
    %59 = arith.addf %57, %58 : vector<8x32xf32>
    %60 = math.tanh %59 : vector<8x32xf32>
    %61 = vector.extract_strided_slice %35 {offsets = [48, 0], sizes = [8, 32], strides = [1, 1]} : vector<64x32xf32> to vector<8x32xf32>
    %cst_24 = arith.constant dense<0.000000e+00> : vector<8x32xf32>
    %62 = tpu.matmul %60, %1, %cst_24 {dimension_numbers = #tpu.dot_dimension_numbers<[1], [0], [0], [1], [0, 0, 1, 1], [], []>} : vector<8x32xf32>, vector<32x32xf32>, vector<8x32xf32> -> vector<8x32xf32>
    %63 = arith.addf %61, %62 : vector<8x32xf32>
    %64 = math.tanh %63 : vector<8x32xf32>
    %65 = vector.extract_strided_slice %35 {offsets = [56, 0], sizes = [8, 32], strides = [1, 1]} : vector<64x32xf32> to vector<8x32xf32>
    %cst_25 = arith.constant dense<0.000000e+00> : vector<8x32xf32>
    %66 = tpu.matmul %64, %1, %cst_25 {dimension_numbers = #tpu.dot_dimension_numbers<[1], [0], [0], [1], [0, 0, 1, 1], [], []>} : vector<8x32xf32>, vector<32x32xf32>, vector<8x32xf32> -> vector<8x32xf32>
    %67 = arith.addf %65, %66 : vector<8x32xf32>
    %68 = math.tanh %67 : vector<8x32xf32>
    %c48 = arith.constant 48 : index
    %c0_26 = arith.constant 0 : index
    %69 = vector.load %arg1[%c48, %c0_26] : memref<128x32xf32, #tpu.memory_space<vmem>>, vector<32x32xf32>
    %c80 = arith.constant 80 : index
    %c0_27 = arith.constant 0 : index
    %70 = vector.load %arg1[%c80, %c0_27] : memref<128x32xf32, #tpu.memory_space<vmem>>, vector<1x32xf32>
    %cst_28 = arith.constant dense<0.000000e+00> : vector<8x32xf32>
    %71 = tpu.matmul %68, %69, %cst_28 {dimension_numbers = #tpu.dot_dimension_numbers<[1], [0], [0], [1], [0, 0, 1, 1], [], []>} : vector<8x32xf32>, vector<32x32xf32>, vector<8x32xf32> -> vector<8x32xf32>
    %72 = vector.broadcast %70 : vector<1x32xf32> to vector<8x32xf32>
    %73 = arith.addf %71, %72 : vector<8x32xf32>
    %cst_29 = arith.constant 0.000000e+00 : f32
    %74 = vector.broadcast %cst_29 : f32 to vector<8x32xf32>
    %75 = arith.maximumf %73, %74 : vector<8x32xf32>
    %c88 = arith.constant 88 : index
    %c0_30 = arith.constant 0 : index
    %76 = vector.load %arg1[%c88, %c0_30] : memref<128x32xf32, #tpu.memory_space<vmem>>, vector<32x32xf32>
    %77 = vector.extract_strided_slice %76 {offsets = [0, 0], sizes = [32, 4], strides = [1, 1]} : vector<32x32xf32> to vector<32x4xf32>
    %c120 = arith.constant 120 : index
    %c0_31 = arith.constant 0 : index
    %78 = vector.load %arg1[%c120, %c0_31] : memref<128x32xf32, #tpu.memory_space<vmem>>, vector<1x32xf32>
    %79 = vector.extract_strided_slice %78 {offsets = [0, 0], sizes = [1, 4], strides = [1, 1]} : vector<1x32xf32> to vector<1x4xf32>
    %cst_32 = arith.constant dense<0.000000e+00> : vector<8x4xf32>
    %80 = tpu.matmul %75, %77, %cst_32 {dimension_numbers = #tpu.dot_dimension_numbers<[1], [0], [0], [1], [0, 0, 1, 1], [], []>} : vector<8x32xf32>, vector<32x4xf32>, vector<8x4xf32> -> vector<8x4xf32>
    %81 = vector.broadcast %79 : vector<1x4xf32> to vector<8x4xf32>
    %82 = arith.addf %80, %81 : vector<8x4xf32>
    %83 = vector.extract_strided_slice %82 {offsets = [0, 0], sizes = [2, 4], strides = [1, 1]} : vector<8x4xf32> to vector<2x4xf32>
    %c0_33 = arith.constant 0 : index
    %c0_34 = arith.constant 0 : index
    %84 = vector.load %arg2[%c0_33, %c0_34] : memref<2x4xf32, #tpu.memory_space<vmem>>, vector<2x4xf32>
    tpu.vector_store %arg2[%c0_33, %c0_34], %83 {strides = array<i32>} : memref<2x4xf32, #tpu.memory_space<vmem>>, vector<2x4xf32>,
    return
  }
}

</mosaic_0001>

<llo_original>
// kernel: tpu_custom_call.1
$region0: #{tpu_custom_call.1}
  #allocation0 [shape = 'u32[]', space=smem, size = 0x4, offset = 0x4, fixed_abs, tag = 'smem constant byte address 0x4 - core index']
  #allocation1 [shape = 'u32[72,128]{1,0:T(1,128)}', space=vmem, size = 0x9000, scoped, tag = 'internal scratch']
  %s0 = inlined_call_operand.vmem [shape: f32[2,8,8], index: 0, kind: input, shape index: {}]
  %s1 = inlined_call_operand.vmem [shape: f32[128,32], index: 1, kind: input, shape index: {}]
  %s2 = inlined_call_operand.hbm [shape: f32[2,4], index: 2, kind: output, shape index: {}]
  %s3 = sld [smem:[#allocation0]]
  $region18: #{tpu_custom_call.1} parent=0
    _
  %s5 = ssub.s32 1, %s3
  %s6 = scalar_select 0, %s5, %s3
  $region1: #{tpu_custom_call.1} parent=0
    #allocation2 [shape = 'u8[1024]{0}', space=vmem, size = 0x400, scoped, tag = 'output window, operand 0, single buffered']
    #allocation3 [shape = 's32[1]{0}', space=sflag, size = 0x4, scoped, tag = 'scoped memory for tpu_custom_call.1']
    %7 = vsyncpa [#allocation3], 0
    // Predicated region
    $region2: #{tpu_custom_call.1} parent=1 // pred_check
      _
    $region3: #{tpu_custom_call.1} parent=1 // pred_check_branch
      %9 = sbr.rel (0) target = $region5
    $region4: #{tpu_custom_call.1} parent=1 // pred_region
      _
    $region5: #{tpu_custom_call.1} parent=1 // pred_fallthru
      _
    // Predicated region
    $region6: #{tpu_custom_call.1} parent=1 // pred_check
      _
    $region7: #{tpu_custom_call.1} parent=1 // pred_check_branch
      %11 = sbr.rel (0) target = $region9
    $region8: #{tpu_custom_call.1} parent=1 // pred_region
      _
    $region9: #{tpu_custom_call.1} parent=1 // pred_fallthru
      _
    %v12 = vld [vmem:[%s1] sm:$0xff]
    %v13 = vld [vmem:[%s1 + $0x8] sm:$0xff]
    %v14 = vld [vmem:[%s1 + $0x10] sm:$0xff]
    %v15 = vld [vmem:[%s1 + $0x18] sm:$0xff]
    %v16 = vld [vmem:[%s1 + $0x20] sm:$0xff]
    %v17 = vld [vmem:[%s1 + $0x28] sm:$0x1]
    %v18 = vlaneseq
    %v19 = vshrl.u32 %v18, 7
    %v20 = vadd.s32 %v19, 8
    %v21 = vadd.s32 %v19, 16
    %v22 = vadd.s32 %v19, 24
    %v23 = vadd.s32 %v19, 32
    %v24 = vadd.s32 %v19, 40
    %v25 = vadd.s32 %v19, 48
    %v26 = vadd.s32 %v19, 56
    %v27 = vlaneseq
    %v28 = vand.u32 %v27, 127
    %v29 = vld [vmem:[%s0] sm:$0xff]
    %v30 = vperm.slane %v17, 0
    %vm31 = vcmask 64512
    %v33 = vsel %vm31, %v29, 0
    %35 = vmatpush.msra.mxu0 0.0
    %36 = vmatpush.msra.mxu0 0.0
    %37 = vmatpush.msra.mxu0 0.0
    %38 = vmatpush.msra.mxu0 0.0
    %39 = vmatpush.msra.mxu0 0.0
    %40 = vmatpush.msra.mxu0 0.0
    %41 = vmatpush.msra.mxu0 0.0
    %42 = vmatpush.msra.mxu0 0.0
    %43 = vmatpush.msra.mxu0 0.0
    %44 = vmatpush.msra.mxu0 0.0
    %45 = vmatpush.msra.mxu0 0.0
    %46 = vmatpush.msra.mxu0 0.0
    %47 = vmatpush.msra.mxu0 0.0
    %48 = vmatpush.msra.mxu0 0.0
    %49 = vmatpush.msra.mxu0 0.0
    %50 = vmatpush.msra.mxu0 %v12
    %51 = vmatmul.f32.gmra.mxu0 %v33
    %v52 = vpop.f32.mrf.mxu0
    %v53 = vadd.f32 %v30, %v52
    %54 = vdwg.mxu0
    %v55 = vmul.u32 %v28, 8
    %vm56 = vcmp.eq.s32.totalorder %v19, %v55
    %vm57 = vcmp.eq.s32.totalorder %v20, %v55
    %vm58 = vcmp.eq.s32.totalorder %v21, %v55
    %vm59 = vcmp.eq.s32.totalorder %v22, %v55
    %vm60 = vcmp.eq.s32.totalorder %v23, %v55
    %vm61 = vcmp.eq.s32.totalorder %v24, %v55
    %vm62 = vcmp.eq.s32.totalorder %v25, %v55
    %vm63 = vcmp.eq.s32.totalorder %v26, %v55
    %v64 = vsel %vm56, 1.0, 0.0
    %v65 = vsel %vm57, 1.0, 0.0
    %v66 = vsel %vm58, 1.0, 0.0
    %v67 = vsel %vm59, 1.0, 0.0
    %v68 = vsel %vm60, 1.0, 0.0
    %v69 = vsel %vm61, 1.0, 0.0
    %v70 = vsel %vm62, 1.0, 0.0
    %v71 = vsel %vm63, 1.0, 0.0
    %s72 = scalar_lea.vmem %s0, 8
    %v73 = vld [vmem:[%s72] sm:$0xff]
    %v75 = vsel %vm31, %v73, 0
    %77 = vmatpush.msra.mxu0 0.0
    %78 = vmatpush.msra.mxu0 0.0
    %79 = vmatpush.msra.mxu0 0.0
    %80 = vmatpush.msra.mxu0 0.0
    %81 = vmatpush.msra.mxu0 0.0
    %82 = vmatpush.msra.mxu0 0.0
    %83 = vmatpush.msra.mxu0 0.0
    %84 = vmatpush.msra.mxu0 0.0
    %85 = vmatpush.msra.mxu0 0.0
    %86 = vmatpush.msra.mxu0 0.0
    %87 = vmatpush.msra.mxu0 0.0
    %88 = vmatpush.msra.mxu0 0.0
    %89 = vmatpush.msra.mxu0 0.0
    %90 = vmatpush.msra.mxu0 0.0
    %91 = vmatpush.msra.mxu0 0.0
    %92 = vmatpush.msra.mxu0 %v12
    %93 = vmatmul.f32.gmra.mxu0 %v75
    %v94 = vpop.f32.mrf.mxu0
    %v95 = vadd.f32 %v30, %v94
    %96 = vdwg.mxu0
    %v97 = vadd.s32 %v55, 1
    %vm98 = vcmp.eq.s32.totalorder %v19, %v97
    %vm99 = vcmp.eq.s32.totalorder %v20, %v97
    %vm100 = vcmp.eq.s32.totalorder %v21, %v97
    %vm101 = vcmp.eq.s32.totalorder %v22, %v97
    %vm102 = vcmp.eq.s32.totalorder %v23, %v97
    %vm103 = vcmp.eq.s32.totalorder %v24, %v97
    %vm104 = vcmp.eq.s32.totalorder %v25, %v97
    %vm105 = vcmp.eq.s32.totalorder %v26, %v97
    %v106 = vsel %vm98, 1.0, 0.0
    %v107 = vsel %vm99, 1.0, 0.0
    %v108 = vsel %vm100, 1.0, 0.0
    %v109 = vsel %vm101, 1.0, 0.0
    %v110 = vsel %vm102, 1.0, 0.0
    %v111 = vsel %vm103, 1.0, 0.0
    %v112 = vsel %vm104, 1.0, 0.0
    %v113 = vsel %vm105, 1.0, 0.0
    %v115 = vsel %vm31, %v106, 0
    %v118 = vsel %vm31, %v107, 0
    %v121 = vsel %vm31, %v108, 0
    %v124 = vsel %vm31, %v109, 0
    %v127 = vsel %vm31, %v110, 0
    %v130 = vsel %vm31, %v111, 0
    %v133 = vsel %vm31, %v112, 0
    %v136 = vsel %vm31, %v113, 0
    %138 = vmatpush.msra.mxu0 0.0
    %139 = vmatpush.msra.mxu0 0.0
    %140 = vmatpush.msra.mxu0 0.0
    %141 = vmatpush.msra.mxu0 0.0
    %142 = vmatpush.msra.mxu0 0.0
    %143 = vmatpush.msra.mxu0 0.0
    %144 = vmatpush.msra.mxu0 0.0
    %145 = vmatpush.msra.mxu0 0.0
    %146 = vmatpush.msra.mxu0 0.0
    %147 = vmatpush.msra.mxu0 0.0
    %148 = vmatpush.msra.mxu0 0.0
    %149 = vmatpush.msra.mxu0 0.0
    %150 = vmatpush.msra.mxu0 0.0
    %151 = vmatpush.msra.mxu0 0.0
    %152 = vmatpush.msra.mxu0 0.0
    %153 = vmatpush.msra.mxu0 %v95
    %154 = vmatmul.f32.gmra.mxu0 %v115
    %v155 = vpop.f32.mrf.mxu0
    %v156 = vadd.f32 0.0, %v155
    %157 = vmatmul.f32.gmra.mxu0 %v118
    %v158 = vpop.f32.mrf.mxu0
    %v159 = vadd.f32 0.0, %v158
    %160 = vmatmul.f32.gmra.mxu0 %v121
    %v161 = vpop.f32.mrf.mxu0
    %v162 = vadd.f32 0.0, %v161
    %163 = vmatmul.f32.gmra.mxu0 %v124
    %v164 = vpop.f32.mrf.mxu0
    %v165 = vadd.f32 0.0, %v164
    %166 = vmatmul.f32.gmra.mxu0 %v127
    %v167 = vpop.f32.mrf.mxu0
    %v168 = vadd.f32 0.0, %v167
    %169 = vmatmul.f32.gmra.mxu0 %v130
    %v170 = vpop.f32.mrf.mxu0
    %v171 = vadd.f32 0.0, %v170
    %172 = vmatmul.f32.gmra.mxu0 %v133
    %v173 = vpop.f32.mrf.mxu0
    %v174 = vadd.f32 0.0, %v173
    %175 = vmatmul.f32.gmra.mxu0 %v136
    %v176 = vpop.f32.mrf.mxu0
    %v177 = vadd.f32 0.0, %v176
    %178 = vdwg.mxu0
    %v180 = vsel %vm31, %v64, 0
    %v183 = vsel %vm31, %v65, 0
    %v186 = vsel %vm31, %v66, 0
    %v189 = vsel %vm31, %v67, 0
    %v192 = vsel %vm31, %v68, 0
    %v195 = vsel %vm31, %v69, 0
    %v198 = vsel %vm31, %v70, 0
    %v201 = vsel %vm31, %v71, 0
    %203 = vmatpush.msra.mxu0 0.0
    %204 = vmatpush.msra.mxu0 0.0
    %205 = vmatpush.msra.mxu0 0.0
    %206 = vmatpush.msra.mxu0 0.0
    %207 = vmatpush.msra.mxu0 0.0
    %208 = vmatpush.msra.mxu0 0.0
    %209 = vmatpush.msra.mxu0 0.0
    %210 = vmatpush.msra.mxu0 0.0
    %211 = vmatpush.msra.mxu0 0.0
    %212 = vmatpush.msra.mxu0 0.0
    %213 = vmatpush.msra.mxu0 0.0
    %214 = vmatpush.msra.mxu0 0.0
    %215 = vmatpush.msra.mxu0 0.0
    %216 = vmatpush.msra.mxu0 0.0
    %217 = vmatpush.msra.mxu0 0.0
    %218 = vmatpush.msra.mxu0 %v53
    %219 = vmatmul.f32.gmra.mxu0 %v180
    %v220 = vpop.f32.mrf.mxu0
    %v221 = vadd.f32 %v156, %v220
    %222 = vmatmul.f32.gmra.mxu0 %v183
    %v223 = vpop.f32.mrf.mxu0
    %v224 = vadd.f32 %v159, %v223
    %225 = vmatmul.f32.gmra.mxu0 %v186
    %v226 = vpop.f32.mrf.mxu0
    %v227 = vadd.f32 %v162, %v226
    %228 = vmatmul.f32.gmra.mxu0 %v189
    %v229 = vpop.f32.mrf.mxu0
    %v230 = vadd.f32 %v165, %v229
    %231 = vmatmul.f32.gmra.mxu0 %v192
    %v232 = vpop.f32.mrf.mxu0
    %v233 = vadd.f32 %v168, %v232
    %234 = vmatmul.f32.gmra.mxu0 %v195
    %v235 = vpop.f32.mrf.mxu0
    %v236 = vadd.f32 %v171, %v235
    %237 = vmatmul.f32.gmra.mxu0 %v198
    %v238 = vpop.f32.mrf.mxu0
    %v239 = vadd.f32 %v174, %v238
    %240 = vmatmul.f32.gmra.mxu0 %v201
    %v241 = vpop.f32.mrf.mxu0
    %v242 = vadd.f32 %v177, %v241
    %243 = vdwg.mxu0
    %vm244 = vcmask 261120
    %v246 = vsel %vm244, 0.0, 0
    %248 = vmatpush.msra.mxu0 0.0
    %249 = vmatpush.msra.mxu0 0.0
    %250 = vmatpush.msra.mxu0 0.0
    %251 = vmatpush.msra.mxu0 0.0
    %252 = vmatpush.msra.mxu0 0.0
    %253 = vmatpush.msra.mxu0 0.0
    %254 = vmatpush.msra.mxu0 0.0
    %255 = vmatpush.msra.mxu0 0.0
    %256 = vmatpush.msra.mxu0 0.0
    %257 = vmatpush.msra.mxu0 0.0
    %258 = vmatpush.msra.mxu0 0.0
    %259 = vmatpush.msra.mxu0 0.0
    %260 = vmatpush.msra.mxu0 %v16
    %261 = vmatpush.msra.mxu0 %v15
    %262 = vmatpush.msra.mxu0 %v14
    %263 = vmatpush.msra.mxu0 %v13
    %264 = vmatmul.f32.gmra.mxu0 %v246
    %v265 = vpop.f32.mrf.mxu0
    %v266 = vadd.f32 0.0, %v265
    %267 = vdwg.mxu0
    %v268 = vadd.f32 %v221, %v266
    %v269 = vtanh.pop %v268
    %v271 = vsel %vm244, %v269, 0
    %273 = vmatpush.msra.mxu0 0.0
    %274 = vmatpush.msra.mxu0 0.0
    %275 = vmatpush.msra.mxu0 0.0
    %276 = vmatpush.msra.mxu0 0.0
    %277 = vmatpush.msra.mxu0 0.0
    %278 = vmatpush.msra.mxu0 0.0
    %279 = vmatpush.msra.mxu0 0.0
    %280 = vmatpush.msra.mxu0 0.0
    %281 = vmatpush.msra.mxu0 0.0
    %282 = vmatpush.msra.mxu0 0.0
    %283 = vmatpush.msra.mxu0 0.0
    %284 = vmatpush.msra.mxu0 0.0
    %285 = vmatpush.msra.mxu0 %v16
    %286 = vmatpush.msra.mxu0 %v15
    %287 = vmatpush.msra.mxu0 %v14
    %288 = vmatpush.msra.mxu0 %v13
    %289 = vmatmul.f32.gmra.mxu0 %v271
    %v290 = vpop.f32.mrf.mxu0
    %v291 = vadd.f32 0.0, %v290
    %292 = vdwg.mxu0
    %v293 = vadd.f32 %v224, %v291
    %v294 = vtanh.pop %v293
    %v296 = vsel %vm244, %v294, 0
    %298 = vmatpush.msra.mxu0 0.0
    %299 = vmatpush.msra.mxu0 0.0
    %300 = vmatpush.msra.mxu0 0.0
    %301 = vmatpush.msra.mxu0 0.0
    %302 = vmatpush.msra.mxu0 0.0
    %303 = vmatpush.msra.mxu0 0.0
    %304 = vmatpush.msra.mxu0 0.0
    %305 = vmatpush.msra.mxu0 0.0
    %306 = vmatpush.msra.mxu0 0.0
    %307 = vmatpush.msra.mxu0 0.0
    %308 = vmatpush.msra.mxu0 0.0
    %309 = vmatpush.msra.mxu0 0.0
    %310 = vmatpush.msra.mxu0 %v16
    %311 = vmatpush.msra.mxu0 %v15
    %312 = vmatpush.msra.mxu0 %v14
    %313 = vmatpush.msra.mxu0 %v13
    %314 = vmatmul.f32.gmra.mxu0 %v296
    %v315 = vpop.f32.mrf.mxu0
    %v316 = vadd.f32 0.0, %v315
    %317 = vdwg.mxu0
    %v318 = vadd.f32 %v227, %v316
    %v319 = vtanh.pop %v318
    %v321 = vsel %vm244, %v319, 0
    %323 = vmatpush.msra.mxu0 0.0
    %324 = vmatpush.msra.mxu0 0.0
    %325 = vmatpush.msra.mxu0 0.0
    %326 = vmatpush.msra.mxu0 0.0
    %327 = vmatpush.msra.mxu0 0.0
    %328 = vmatpush.msra.mxu0 0.0
    %329 = vmatpush.msra.mxu0 0.0
    %330 = vmatpush.msra.mxu0 0.0
    %331 = vmatpush.msra.mxu0 0.0
    %332 = vmatpush.msra.mxu0 0.0
    %333 = vmatpush.msra.mxu0 0.0
    %334 = vmatpush.msra.mxu0 0.0
    %335 = vmatpush.msra.mxu0 %v16
    %336 = vmatpush.msra.mxu0 %v15
    %337 = vmatpush.msra.mxu0 %v14
    %338 = vmatpush.msra.mxu0 %v13
    %339 = vmatmul.f32.gmra.mxu0 %v321
    %v340 = vpop.f32.mrf.mxu0
    %v341 = vadd.f32 0.0, %v340
    %342 = vdwg.mxu0
    %v343 = vadd.f32 %v230, %v341
    %v344 = vtanh.pop %v343
    %v346 = vsel %vm244, %v344, 0
    %348 = vmatpush.msra.mxu0 0.0
    %349 = vmatpush.msra.mxu0 0.0
    %350 = vmatpush.msra.mxu0 0.0
    %351 = vmatpush.msra.mxu0 0.0
    %352 = vmatpush.msra.mxu0 0.0
    %353 = vmatpush.msra.mxu0 0.0
    %354 = vmatpush.msra.mxu0 0.0
    %355 = vmatpush.msra.mxu0 0.0
    %356 = vmatpush.msra.mxu0 0.0
    %357 = vmatpush.msra.mxu0 0.0
    %358 = vmatpush.msra.mxu0 0.0
    %359 = vmatpush.msra.mxu0 0.0
    %360 = vmatpush.msra.mxu0 %v16
    %361 = vmatpush.msra.mxu0 %v15
    %362 = vmatpush.msra.mxu0 %v14
    %363 = vmatpush.msra.mxu0 %v13
    %364 = vmatmul.f32.gmra.mxu0 %v346
    %v365 = vpop.f32.mrf.mxu0
    %v366 = vadd.f32 0.0, %v365
    %367 = vdwg.mxu0
    %v368 = vadd.f32 %v233, %v366
    %v369 = vtanh.pop %v368
    %v371 = vsel %vm244, %v369, 0
    %373 = vmatpush.msra.mxu0 0.0
    %374 = vmatpush.msra.mxu0 0.0
    %375 = vmatpush.msra.mxu0 0.0
    %376 = vmatpush.msra.mxu0 0.0
    %377 = vmatpush.msra.mxu0 0.0
    %378 = vmatpush.msra.mxu0 0.0
    %379 = vmatpush.msra.mxu0 0.0
    %380 = vmatpush.msra.mxu0 0.0
    %381 = vmatpush.msra.mxu0 0.0
    %382 = vmatpush.msra.mxu0 0.0
    %383 = vmatpush.msra.mxu0 0.0
    %384 = vmatpush.msra.mxu0 0.0
    %385 = vmatpush.msra.mxu0 %v16
    %386 = vmatpush.msra.mxu0 %v15
    %387 = vmatpush.msra.mxu0 %v14
    %388 = vmatpush.msra.mxu0 %v13
    %389 = vmatmul.f32.gmra.mxu0 %v371
    %v390 = vpop.f32.mrf.mxu0
    %v391 = vadd.f32 0.0, %v390
    %392 = vdwg.mxu0
    %v393 = vadd.f32 %v236, %v391
    %v394 = vtanh.pop %v393
    %v396 = vsel %vm244, %v394, 0
    %398 = vmatpush.msra.mxu0 0.0
    %399 = vmatpush.msra.mxu0 0.0
    %400 = vmatpush.msra.mxu0 0.0
    %401 = vmatpush.msra.mxu0 0.0
    %402 = vmatpush.msra.mxu0 0.0
    %403 = vmatpush.msra.mxu0 0.0
    %404 = vmatpush.msra.mxu0 0.0
    %405 = vmatpush.msra.mxu0 0.0
    %406 = vmatpush.msra.mxu0 0.0
    %407 = vmatpush.msra.mxu0 0.0
    %408 = vmatpush.msra.mxu0 0.0
    %409 = vmatpush.msra.mxu0 0.0
    %410 = vmatpush.msra.mxu0 %v16
    %411 = vmatpush.msra.mxu0 %v15
    %412 = vmatpush.msra.mxu0 %v14
    %413 = vmatpush.msra.mxu0 %v13
    %414 = vmatmul.f32.gmra.mxu0 %v396
    %v415 = vpop.f32.mrf.mxu0
    %v416 = vadd.f32 0.0, %v415
    %417 = vdwg.mxu0
    %v418 = vadd.f32 %v239, %v416
    %v419 = vtanh.pop %v418
    %v421 = vsel %vm244, %v419, 0
    %423 = vmatpush.msra.mxu0 0.0
    %424 = vmatpush.msra.mxu0 0.0
    %425 = vmatpush.msra.mxu0 0.0
    %426 = vmatpush.msra.mxu0 0.0
    %427 = vmatpush.msra.mxu0 0.0
    %428 = vmatpush.msra.mxu0 0.0
    %429 = vmatpush.msra.mxu0 0.0
    %430 = vmatpush.msra.mxu0 0.0
    %431 = vmatpush.msra.mxu0 0.0
    %432 = vmatpush.msra.mxu0 0.0
    %433 = vmatpush.msra.mxu0 0.0
    %434 = vmatpush.msra.mxu0 0.0
    %435 = vmatpush.msra.mxu0 %v16
    %436 = vmatpush.msra.mxu0 %v15
    %437 = vmatpush.msra.mxu0 %v14
    %438 = vmatpush.msra.mxu0 %v13
    %439 = vmatmul.f32.gmra.mxu0 %v421
    %v440 = vpop.f32.mrf.mxu0
    %v441 = vadd.f32 0.0, %v440
    %442 = vdwg.mxu0
    %v443 = vadd.f32 %v242, %v441
    %v444 = vtanh.pop %v443
    %v445 = vld [vmem:[%s1 + $0x30] sm:$0xff]
    %v446 = vld [vmem:[%s1 + $0x38] sm:$0xff]
    %v447 = vld [vmem:[%s1 + $0x40] sm:$0xff]
    %v448 = vld [vmem:[%s1 + $0x48] sm:$0xff]
    %v449 = vld [vmem:[%s1 + $0x50] sm:$0x1]
    %v450 = vperm.slane %v449, 0
    %v452 = vsel %vm244, %v444, 0
    %454 = vmatpush.msra.mxu0 0.0
    %455 = vmatpush.msra.mxu0 0.0
    %456 = vmatpush.msra.mxu0 0.0
    %457 = vmatpush.msra.mxu0 0.0
    %458 = vmatpush.msra.mxu0 0.0
    %459 = vmatpush.msra.mxu0 0.0
    %460 = vmatpush.msra.mxu0 0.0
    %461 = vmatpush.msra.mxu0 0.0
    %462 = vmatpush.msra.mxu0 0.0
    %463 = vmatpush.msra.mxu0 0.0
    %464 = vmatpush.msra.mxu0 0.0
    %465 = vmatpush.msra.mxu0 0.0
    %466 = vmatpush.msra.mxu0 %v448
    %467 = vmatpush.msra.mxu0 %v447
    %468 = vmatpush.msra.mxu0 %v446
    %469 = vmatpush.msra.mxu0 %v445
    %470 = vmatmul.f32.gmra.mxu0 %v452
    %v471 = vpop.f32.mrf.mxu0
    %v472 = vadd.f32 %v450, %v471
    %473 = vdwg.mxu0
    %v474 = vmax.f32 %v472, 0.0
    %v475 = vld [vmem:[%s1 + $0x58] sm:$0xff]
    %v476 = vld [vmem:[%s1 + $0x60] sm:$0xff]
    %v477 = vld [vmem:[%s1 + $0x68] sm:$0xff]
    %v478 = vld [vmem:[%s1 + $0x70] sm:$0xff]
    %v479 = vld [vmem:[%s1 + $0x78] sm:$0x1]
    %v480 = vperm.slane %v479, 0
    %v482 = vsel %vm244, %v474, 0
    %484 = vmatpush.msra.mxu0 0.0
    %485 = vmatpush.msra.mxu0 0.0
    %486 = vmatpush.msra.mxu0 0.0
    %487 = vmatpush.msra.mxu0 0.0
    %488 = vmatpush.msra.mxu0 0.0
    %489 = vmatpush.msra.mxu0 0.0
    %490 = vmatpush.msra.mxu0 0.0
    %491 = vmatpush.msra.mxu0 0.0
    %492 = vmatpush.msra.mxu0 0.0
    %493 = vmatpush.msra.mxu0 0.0
    %494 = vmatpush.msra.mxu0 0.0
    %495 = vmatpush.msra.mxu0 0.0
    %496 = vmatpush.msra.mxu0 %v478
    %497 = vmatpush.msra.mxu0 %v477
    %498 = vmatpush.msra.mxu0 %v476
    %499 = vmatpush.msra.mxu0 %v475
    %500 = vmatmul.f32.gmra.mxu0 %v482
    %v501 = vpop.f32.mrf.mxu0
    %v502 = vadd.f32 %v480, %v501
    %503 = vdwg.mxu0
    %vm504 = vcmask 25600
    %505 = vst.msk [vmem:[#allocation2] sm:$0x3] %vm504, %v502
    // Predicated region
    $region10: #{tpu_custom_call.1} parent=1 // pred_check
      _
    $region11: #{tpu_custom_call.1} parent=1 // pred_check_branch
      %507 = sbr.rel (0) target = $region13
    $region12: #{tpu_custom_call.1} parent=1 // pred_region
      %509 = vsyncadd [#allocation3], 0
      %s511 = sshll.u32 [#allocation2], 4
      %s512 = int_to_ptr.vmem [resolvable:$true] %s511
      %s513 = sshll.u32 %s2, 4
      %s514 = int_to_ptr.hbm [resolvable:$true] %s513
      %516 = dma.vmem_to_hbm [thread:$0]  %s512, 32, %s514, [#allocation3]
    $region13: #{tpu_custom_call.1} parent=1 // pred_fallthru
      _
    // Predicated region
    $region14: #{tpu_custom_call.1} parent=1 // pred_check
      _
    $region15: #{tpu_custom_call.1} parent=1 // pred_check_branch
      %518 = sbr.rel (0) target = $region17
    $region16: #{tpu_custom_call.1} parent=1 // pred_region
      %520 = dma.done [#allocation3], 32
    $region17: #{tpu_custom_call.1} parent=1 // pred_fallthru
      _
    %521 = vsyncpa [#allocation3], 1

</llo_original>
